<compile_context>
chip_gen: v7x
topology: tpu7x:2x2x1
jax: 0.10.0
libtpu: 0.0.40
codegen_flags: <defaults>
</compile_context>

<pallas_src>
import functools

import jax
import jax.numpy as jnp
from jax.experimental import pallas as pl
from jax.experimental.pallas import tpu as pltpu


def _round_up(x, m):
    return ((x + m - 1) // m) * m


def _cdiv(a, b):
    return (a + b - 1) // b


def _choose_tiling(B, block_rows):
    """Pick (TB, B_pad, num_tiles).

    - TB is a multiple of 8 (sublane granularity).
    - The last tile is nearly full (padding waste bounded by <8*num_tiles rows)
      instead of up to a whole block_rows tile.
    - Tile count is grown towards >=4 (as long as TB stays >=256) so the grid
      shards across both v7x TensorCores and the double-buffered DMA pipeline
      has enough steps to reach steady state.
    """
    B8 = _round_up(max(B, 8), 8)
    num_tiles = _cdiv(B8, block_rows)
    while num_tiles < 4 and _round_up(_cdiv(B8, num_tiles * 2), 8) >= 256:
        num_tiles *= 2
    TB = _round_up(_cdiv(B8, num_tiles), 8)
    B_pad = TB * num_tiles
    return TB, B_pad, num_tiles


def _detector_kernel(
    inputs_ref,   # (TB, n)      f32
    w1_ref,       # (n, 4n)      matmul dtype
    b1_ref,       # (1, 4n)      f32
    w2_ref,       # (4n, n)      matmul dtype
    b2_ref,       # (1, n)       f32
    wl1_ref,      # (n, 64)      matmul dtype
    bl1_ref,      # (1, 64)      f32
    wout_ref,     # (1, 64)      f32  (out-layer weight as a row vector)
    bout_ref,     # (1, 1)       f32  in SMEM (scalar)
    out_ref,      # (TB, 1)      f32  sigmoid output
    zstar_ref,    # (TB, n)      f32
    alpha_ref,    # (TB, n)      f32
    h_ref,        # (TB, 64)     f32
):
    md = w1_ref.dtype

    x = jnp.maximum(inputs_ref[...], 0.0)                      # relu(inputs)

    # --- LinearAttention: Linear(n,4n) -> ReLU -> Linear(4n,n) -> Softmax ---
    a_h = jnp.dot(x.astype(md), w1_ref[...],
                  preferred_element_type=jnp.float32)
    a_h = jnp.maximum(a_h + b1_ref[...], 0.0)
    logits = jnp.dot(a_h.astype(md), w2_ref[...],
                     preferred_element_type=jnp.float32) + b2_ref[...]
    # nn.Softmax() on a 2D input -> softmax along the last axis.
    m = jnp.max(logits, axis=-1, keepdims=True)
    e = jnp.exp(logits - m)
    denom = jnp.sum(e, axis=-1, keepdims=True)
    alpha = e / denom                      # exact reciprocal: free (mem-bound)
    z_star = alpha * x

    # --- linear_1 (Dropout(0.3) is identity in eval mode) ---
    # TODO(synk): training-mode dropout (random mask + 1/(1-p) scale) omitted.
    h = jnp.dot(z_star.astype(md), wl1_ref[...],
                preferred_element_type=jnp.float32) + bl1_ref[...]

    # --- out head: (TB,64)@(64,1) as a lane reduction (avoids an N=1 matmul) ---
    r = jnp.maximum(h, 0.0)
    logit = jnp.sum(r * wout_ref[...], axis=-1, keepdims=True) + bout_ref[0, 0]
    prob = 1.0 / (1.0 + jnp.exp(-logit))   # exact sigmoid

    # Direct per-output stores (no concat temporary, no wrapper re-slice).
    out_ref[...] = prob.astype(out_ref.dtype)
    zstar_ref[...] = z_star.astype(zstar_ref.dtype)
    alpha_ref[...] = alpha.astype(alpha_ref.dtype)
    h_ref[...] = h.astype(h_ref.dtype)


@functools.partial(jax.jit, static_argnames=("block_rows", "matmul_dtype"))
def detector_forward(inputs, params, *, block_rows=8192,
                     matmul_dtype=jnp.float32):
    """Runs the Detector forward pass as one batch-gridded Pallas kernel.

    inputs: (B, n_latents) float32
    params: dict of f32 weight arrays (see init_detector_params).
    Returns (out, z_star, alpha, h) matching the PyTorch module.
    """
    B, n = inputs.shape
    hid = 4 * n
    md = jnp.dtype(matmul_dtype)

    TB, B_pad, num_tiles = _choose_tiling(B, block_rows)
    if B_pad != B:
        inputs = jnp.pad(inputs, ((0, B_pad - B), (0, 0)))
    grid = (num_tiles,)

    # Optional narrow matmul operands (weights are only a few KiB at n~32 so
    # this is a pure accuracy/throughput knob; f32 is the default).
    w1 = params["w1"].astype(md)
    w2 = params["w2"].astype(md)
    wl1 = params["wl1"].astype(md)

    const = lambda i: (0, 0)          # weights/biases stay VMEM-resident
    in_specs = [
        pl.BlockSpec((TB, n), lambda i: (i, 0)),   # inputs, streamed over batch
        pl.BlockSpec((n, hid), const),             # w1
        pl.BlockSpec((1, hid), const),             # b1
        pl.BlockSpec((hid, n), const),             # w2
        pl.BlockSpec((1, n), const),               # b2
        pl.BlockSpec((n, 64), const),              # wl1
        pl.BlockSpec((1, 64), const),              # bl1
        pl.BlockSpec((1, 64), const),              # wout
        pl.BlockSpec(memory_space=pltpu.MemorySpace.SMEM),   # bout scalar
    ]
    out_specs = (
        pl.BlockSpec((TB, 1), lambda i: (i, 0)),    # sigmoid output column
        pl.BlockSpec((TB, n), lambda i: (i, 0)),    # z_star
        pl.BlockSpec((TB, n), lambda i: (i, 0)),    # alpha
        pl.BlockSpec((TB, 64), lambda i: (i, 0)),   # h
    )
    out_shapes = (
        jax.ShapeDtypeStruct((B_pad, 1), jnp.float32),
        jax.ShapeDtypeStruct((B_pad, n), jnp.float32),
        jax.ShapeDtypeStruct((B_pad, n), jnp.float32),
        jax.ShapeDtypeStruct((B_pad, 64), jnp.float32),
    )

    flops = 2 * B_pad * (n * hid + hid * n + n * 64 + 64)
    transcendentals = B_pad * (n + 1)          # softmax exps + sigmoid exp
    bytes_accessed = (
        B_pad * n * 4                                    # inputs
        + (n * hid + hid * n + n * 64) * md.itemsize     # matmul weights
        + (hid + n + 64 + 64 + 1) * 4                    # biases + wout + bout
        + B_pad * (2 * n + 64 + 1) * 4                   # outputs
    )

    # NOTE: if profiling shows exposed DMA on v6e, pipeline depth can be raised
    # on the dominant output streams via pipeline_mode=pl.Buffered(3); default
    # double-buffering is kept for portability (VMEM headroom on v7x).
    out, z_star, alpha, h = pl.pallas_call(
        _detector_kernel,
        out_shape=out_shapes,
        grid_spec=pltpu.PrefetchScalarGridSpec(
            num_scalar_prefetch=0,
            grid=grid,
            in_specs=in_specs,
            out_specs=out_specs,
        ),
        compiler_params=pltpu.CompilerParams(
            dimension_semantics=("parallel",),       # megacore batch sharding
            vmem_limit_bytes=32 * 1024 * 1024,       # safe on v5e/v6e/v7x
        ),
        cost_estimate=pl.CostEstimate(
            flops=int(flops),
            transcendentals=int(transcendentals),
            bytes_accessed=int(bytes_accessed),
        ),
    )(inputs, w1, params["b1"], w2, params["b2"], wl1, params["bl1"],
      params["wout"], params["bout"])

    if B_pad != B:
        out, z_star, alpha, h = out[:B], z_star[:B], alpha[:B], h[:B]
    return out, z_star, alpha, h


def init_detector_params(key, n_latents):
    """Deterministic PyTorch-style (uniform +/- 1/sqrt(fan_in)) init.

    Weights are stored already transposed to (in_features, out_features) so the
    kernel can use plain x @ W; the `out` layer weight is a (1, 64) row vector.
    """
    keys = jax.random.split(key, 8)

    def uni(k, shape, fan_in):
        bound = 1.0 / jnp.sqrt(float(fan_in))
        return jax.random.uniform(k, shape, jnp.float32, -bound, bound)

    hid = n_latents * 4
    return {
        "w1": uni(keys[0], (n_latents, hid), n_latents),
        "b1": uni(keys[1], (1, hid), n_latents),
        "w2": uni(keys[2], (hid, n_latents), hid),
        "b2": uni(keys[3], (1, n_latents), hid),
        "wl1": uni(keys[4], (n_latents, 64), n_latents),
        "bl1": uni(keys[5], (1, 64), n_latents),
        "wout": uni(keys[6], (1, 64), 64),
        "bout": uni(keys[7], (1, 1), 64),
    }


def _reference_forward(inputs, params):
    """Pure-JAX f32 reference for correctness checking."""
    x = jnp.maximum(inputs, 0.0)
    a_h = jnp.maximum(x @ params["w1"] + params["b1"], 0.0)
    logits = a_h @ params["w2"] + params["b2"]
    alpha = jax.nn.softmax(logits, axis=-1)
    z_star = alpha * x
    h = z_star @ params["wl1"] + params["bl1"]
    out = jax.nn.sigmoid(jnp.sum(jnp.maximum(h, 0.0) * params["wout"],
                                 axis=-1, keepdims=True) + params["bout"])
    return out, z_star, alpha, h


if __name__ == "__main__":
    key = jax.random.PRNGKey(0)
    k_in, k_par = jax.random.split(key)

    batch, n_latents = 8, 32
    inputs = jax.random.normal(k_in, (batch, n_latents), jnp.float32)
    params = init_detector_params(k_par, n_latents)

    ref = _reference_forward(inputs, params)

    # Default f32 matmul path (exact reciprocals) -> tight tolerance.
    got = detector_forward(inputs, params)
    jax.block_until_ready(got)
    for g, w in zip(got, ref):
        assert g.shape == w.shape and g.dtype == w.dtype
        assert jnp.allclose(g, w, atol=1e-4, rtol=1e-4), \
            float(jnp.max(jnp.abs(g - w)))

    # Opt-in bf16 matmul path (v6e/v7x MXU-narrow); looser tolerance.
    got_bf16 = detector_forward(inputs, params, matmul_dtype=jnp.bfloat16)
    jax.block_until_ready(got_bf16)
    for g, w in zip(got_bf16, ref):
        assert g.shape == w.shape and g.dtype == w.dtype
        assert jnp.allclose(g, w, atol=3e-2, rtol=3e-2), \
            float(jnp.max(jnp.abs(g - w)))

    print("KERNEL_OK")
</pallas_src>

<mosaic_0001>
module attributes {stable_mosaic.version = 11 : i64} {
  func.func @_detector_kernel(%arg0: i32, %arg1: memref<8x32xf32, #tpu.memory_space<vmem>>, %arg2: memref<32x128xf32, #tpu.memory_space<vmem>>, %arg3: memref<1x128xf32, #tpu.memory_space<vmem>>, %arg4: memref<128x32xf32, #tpu.memory_space<vmem>>, %arg5: memref<1x32xf32, #tpu.memory_space<vmem>>, %arg6: memref<32x64xf32, #tpu.memory_space<vmem>>, %arg7: memref<1x64xf32, #tpu.memory_space<vmem>>, %arg8: memref<1x64xf32, #tpu.memory_space<vmem>>, %arg9: memref<1x1xf32, #tpu.memory_space<smem>>, %arg10: memref<8x1xf32, #tpu.memory_space<vmem>>, %arg11: memref<8x32xf32, #tpu.memory_space<vmem>>, %arg12: memref<8x32xf32, #tpu.memory_space<vmem>>, %arg13: memref<8x64xf32, #tpu.memory_space<vmem>>) attributes {dimension_semantics = [#tpu.dimension_semantics<parallel>], iteration_bounds = array<i64: 1>, scalar_prefetch = 0 : i64, scratch_operands = 0 : i64, tpu.core_type = #tpu.core_type<tc>, window_params = [{transform_indices = @transform_0, window_bounds = array<i64: 8, 32>}, {pipeline_mode = #tpu.pipeline_mode<synchronous>, transform_indices = @transform_1, window_bounds = array<i64: 32, 128>}, {pipeline_mode = #tpu.pipeline_mode<synchronous>, transform_indices = @transform_2, window_bounds = array<i64: 1, 128>}, {pipeline_mode = #tpu.pipeline_mode<synchronous>, transform_indices = @transform_3, window_bounds = array<i64: 128, 32>}, {pipeline_mode = #tpu.pipeline_mode<synchronous>, transform_indices = @transform_4, window_bounds = array<i64: 1, 32>}, {pipeline_mode = #tpu.pipeline_mode<synchronous>, transform_indices = @transform_5, window_bounds = array<i64: 32, 64>}, {pipeline_mode = #tpu.pipeline_mode<synchronous>, transform_indices = @transform_6, window_bounds = array<i64: 1, 64>}, {pipeline_mode = #tpu.pipeline_mode<synchronous>, transform_indices = @transform_7, window_bounds = array<i64: 1, 64>}, {transform_indices = @transform_8, window_bounds = array<i64: 1, 1>}, {transform_indices = @transform_9, window_bounds = array<i64: 8, 1>}, {transform_indices = @transform_10, window_bounds = array<i64: 8, 32>}, {transform_indices = @transform_11, window_bounds = array<i64: 8, 32>}, {transform_indices = @transform_12, window_bounds = array<i64: 8, 64>}]} {
    %c0 = arith.constant 0 : index
    %c0_0 = arith.constant 0 : index
    %0 = vector.load %arg1[%c0, %c0_0] : memref<8x32xf32, #tpu.memory_space<vmem>>, vector<8x32xf32>
    %cst = arith.constant 0.000000e+00 : f32
    %1 = vector.broadcast %cst : f32 to vector<8x32xf32>
    %2 = arith.maximumf %0, %1 : vector<8x32xf32>
    %c0_1 = arith.constant 0 : index
    %c0_2 = arith.constant 0 : index
    %3 = vector.load %arg2[%c0_1, %c0_2] : memref<32x128xf32, #tpu.memory_space<vmem>>, vector<32x128xf32>
    %cst_3 = arith.constant dense<0.000000e+00> : vector<8x128xf32>
    %4 = tpu.matmul %2, %3, %cst_3 {dimension_numbers = #tpu.dot_dimension_numbers<[1], [0], [0], [1], [0, 0, 1, 1], [], []>} : vector<8x32xf32>, vector<32x128xf32>, vector<8x128xf32> -> vector<8x128xf32>
    %c0_4 = arith.constant 0 : index
    %c0_5 = arith.constant 0 : index
    %5 = vector.load %arg3[%c0_4, %c0_5] : memref<1x128xf32, #tpu.memory_space<vmem>>, vector<1x128xf32>
    %6 = vector.broadcast %5 : vector<1x128xf32> to vector<8x128xf32>
    %7 = arith.addf %4, %6 : vector<8x128xf32>
    %cst_6 = arith.constant 0.000000e+00 : f32
    %8 = vector.broadcast %cst_6 : f32 to vector<8x128xf32>
    %9 = arith.maximumf %7, %8 : vector<8x128xf32>
    %c0_7 = arith.constant 0 : index
    %c0_8 = arith.constant 0 : index
    %10 = vector.load %arg4[%c0_7, %c0_8] : memref<128x32xf32, #tpu.memory_space<vmem>>, vector<128x32xf32>
    %cst_9 = arith.constant dense<0.000000e+00> : vector<8x32xf32>
    %11 = tpu.matmul %9, %10, %cst_9 {dimension_numbers = #tpu.dot_dimension_numbers<[1], [0], [0], [1], [0, 0, 1, 1], [], []>} : vector<8x128xf32>, vector<128x32xf32>, vector<8x32xf32> -> vector<8x32xf32>
    %c0_10 = arith.constant 0 : index
    %c0_11 = arith.constant 0 : index
    %12 = vector.load %arg5[%c0_10, %c0_11] : memref<1x32xf32, #tpu.memory_space<vmem>>, vector<1x32xf32>
    %13 = vector.broadcast %12 : vector<1x32xf32> to vector<8x32xf32>
    %14 = arith.addf %11, %13 : vector<8x32xf32>
    %cst_12 = arith.constant dense<0xFF800000> : vector<8xf32>
    %15 = vector.multi_reduction <maximumf>, %14, %cst_12 [1] : vector<8x32xf32> to vector<8xf32>
    %16 = vector.shape_cast %15 : vector<8xf32> to vector<8x1xf32>
    %17 = vector.broadcast %16 : vector<8x1xf32> to vector<8x32xf32>
    %18 = arith.subf %14, %17 : vector<8x32xf32>
    %19 = math.exp %18 : vector<8x32xf32>
    %cst_13 = arith.constant dense<0.000000e+00> : vector<8xf32>
    %20 = vector.multi_reduction <add>, %19, %cst_13 [1] : vector<8x32xf32> to vector<8xf32>
    %21 = vector.shape_cast %20 : vector<8xf32> to vector<8x1xf32>
    %22 = vector.broadcast %21 : vector<8x1xf32> to vector<8x32xf32>
    %23 = arith.divf %19, %22 : vector<8x32xf32>
    %24 = arith.mulf %23, %2 : vector<8x32xf32>
    %c0_14 = arith.constant 0 : index
    %c0_15 = arith.constant 0 : index
    %25 = vector.load %arg6[%c0_14, %c0_15] : memref<32x64xf32, #tpu.memory_space<vmem>>, vector<32x64xf32>
    %cst_16 = arith.constant dense<0.000000e+00> : vector<8x64xf32>
    %26 = tpu.matmul %24, %25, %cst_16 {dimension_numbers = #tpu.dot_dimension_numbers<[1], [0], [0], [1], [0, 0, 1, 1], [], []>} : vector<8x32xf32>, vector<32x64xf32>, vector<8x64xf32> -> vector<8x64xf32>
    %c0_17 = arith.constant 0 : index
    %c0_18 = arith.constant 0 : index
    %27 = vector.load %arg7[%c0_17, %c0_18] : memref<1x64xf32, #tpu.memory_space<vmem>>, vector<1x64xf32>
    %28 = vector.broadcast %27 : vector<1x64xf32> to vector<8x64xf32>
    %29 = arith.addf %26, %28 : vector<8x64xf32>
    %cst_19 = arith.constant 0.000000e+00 : f32
    %30 = vector.broadcast %cst_19 : f32 to vector<8x64xf32>
    %31 = arith.maximumf %29, %30 : vector<8x64xf32>
    %c0_20 = arith.constant 0 : index
    %c0_21 = arith.constant 0 : index
    %32 = vector.load %arg8[%c0_20, %c0_21] : memref<1x64xf32, #tpu.memory_space<vmem>>, vector<1x64xf32>
    %33 = vector.broadcast %32 : vector<1x64xf32> to vector<8x64xf32>
    %34 = arith.mulf %31, %33 : vector<8x64xf32>
    %cst_22 = arith.constant dense<0.000000e+00> : vector<8xf32>
    %35 = vector.multi_reduction <add>, %34, %cst_22 [1] : vector<8x64xf32> to vector<8xf32>
    %36 = vector.shape_cast %35 : vector<8xf32> to vector<8x1xf32>
    %c0_23 = arith.constant 0 : index
    %c0_24 = arith.constant 0 : index
    %37 = memref.load %arg9[%c0_23, %c0_24] : memref<1x1xf32, #tpu.memory_space<smem>>
    %38 = vector.broadcast %37 : f32 to vector<8x1xf32>
    %39 = arith.addf %36, %38 : vector<8x1xf32>
    %cst_25 = arith.constant 0.000000e+00 : f32
    %40 = vector.broadcast %cst_25 : f32 to vector<8x1xf32>
    %41 = arith.subf %40, %39 : vector<8x1xf32>
    %42 = math.exp %41 : vector<8x1xf32>
    %cst_26 = arith.constant 1.000000e+00 : f32
    %43 = vector.broadcast %cst_26 : f32 to vector<8x1xf32>
    %44 = arith.addf %43, %42 : vector<8x1xf32>
    %cst_27 = arith.constant 1.000000e+00 : f32
    %45 = vector.broadcast %cst_27 : f32 to vector<8x1xf32>
    %46 = arith.divf %45, %44 : vector<8x1xf32>
    %c0_28 = arith.constant 0 : index
    %c0_29 = arith.constant 0 : index
    %47 = vector.load %arg10[%c0_28, %c0_29] : memref<8x1xf32, #tpu.memory_space<vmem>>, vector<8x1xf32>
    tpu.vector_store %arg10[%c0_28, %c0_29], %46 {strides = array<i32>} : memref<8x1xf32, #tpu.memory_space<vmem>>, vector<8x1xf32>,
    %c0_30 = arith.constant 0 : index
    %c0_31 = arith.constant 0 : index
    %48 = vector.load %arg11[%c0_30, %c0_31] : memref<8x32xf32, #tpu.memory_space<vmem>>, vector<8x32xf32>
    tpu.vector_store %arg11[%c0_30, %c0_31], %24 {strides = array<i32>} : memref<8x32xf32, #tpu.memory_space<vmem>>, vector<8x32xf32>,
    %c0_32 = arith.constant 0 : index
    %c0_33 = arith.constant 0 : index
    %49 = vector.load %arg12[%c0_32, %c0_33] : memref<8x32xf32, #tpu.memory_space<vmem>>, vector<8x32xf32>
    tpu.vector_store %arg12[%c0_32, %c0_33], %23 {strides = array<i32>} : memref<8x32xf32, #tpu.memory_space<vmem>>, vector<8x32xf32>,
    %c0_34 = arith.constant 0 : index
    %c0_35 = arith.constant 0 : index
    %50 = vector.load %arg13[%c0_34, %c0_35] : memref<8x64xf32, #tpu.memory_space<vmem>>, vector<8x64xf32>
    tpu.vector_store %arg13[%c0_34, %c0_35], %29 {strides = array<i32>} : memref<8x64xf32, #tpu.memory_space<vmem>>, vector<8x64xf32>,
    return
  }
  func.func @transform_0(%arg0: i32) -> (i32, i32) {
    %c0_i32 = arith.constant 0 : i32
    %c0_i32_0 = arith.constant 0 : i32
    return %arg0, %c0_i32 : i32, i32
  }
  func.func @transform_1(%arg0: i32) -> (i32, i32) {
    %c0_i32 = arith.constant 0 : i32
    %c0_i32_0 = arith.constant 0 : i32
    %c0_i32_1 = arith.constant 0 : i32
    return %c0_i32, %c0_i32_0 : i32, i32
  }
  func.func @transform_2(%arg0: i32) -> (i32, i32) {
    %c0_i32 = arith.constant 0 : i32
    %c0_i32_0 = arith.constant 0 : i32
    %c0_i32_1 = arith.constant 0 : i32
    return %c0_i32, %c0_i32_0 : i32, i32
  }
  func.func @transform_3(%arg0: i32) -> (i32, i32) {
    %c0_i32 = arith.constant 0 : i32
    %c0_i32_0 = arith.constant 0 : i32
    %c0_i32_1 = arith.constant 0 : i32
    return %c0_i32, %c0_i32_0 : i32, i32
  }
  func.func @transform_4(%arg0: i32) -> (i32, i32) {
    %c0_i32 = arith.constant 0 : i32
    %c0_i32_0 = arith.constant 0 : i32
    %c0_i32_1 = arith.constant 0 : i32
    return %c0_i32, %c0_i32_0 : i32, i32
  }
  func.func @transform_5(%arg0: i32) -> (i32, i32) {
    %c0_i32 = arith.constant 0 : i32
    %c0_i32_0 = arith.constant 0 : i32
    %c0_i32_1 = arith.constant 0 : i32
    return %c0_i32, %c0_i32_0 : i32, i32
  }
  func.func @transform_6(%arg0: i32) -> (i32, i32) {
    %c0_i32 = arith.constant 0 : i32
    %c0_i32_0 = arith.constant 0 : i32
    %c0_i32_1 = arith.constant 0 : i32
    return %c0_i32, %c0_i32_0 : i32, i32
  }
  func.func @transform_7(%arg0: i32) -> (i32, i32) {
    %c0_i32 = arith.constant 0 : i32
    %c0_i32_0 = arith.constant 0 : i32
    %c0_i32_1 = arith.constant 0 : i32
    return %c0_i32, %c0_i32_0 : i32, i32
  }
  func.func @transform_8(%arg0: i32) -> (i32, i32) {
    %c0_i32 = arith.constant 0 : i32
    %c0_i32_0 = arith.constant 0 : i32
    %c0_i32_1 = arith.constant 0 : i32
    return %c0_i32, %c0_i32_0 : i32, i32
  }
  func.func @transform_9(%arg0: i32) -> (i32, i32) {
    %c0_i32 = arith.constant 0 : i32
    %c0_i32_0 = arith.constant 0 : i32
    return %arg0, %c0_i32 : i32, i32
  }
  func.func @transform_10(%arg0: i32) -> (i32, i32) {
    %c0_i32 = arith.constant 0 : i32
    %c0_i32_0 = arith.constant 0 : i32
    return %arg0, %c0_i32 : i32, i32
  }
  func.func @transform_11(%arg0: i32) -> (i32, i32) {
    %c0_i32 = arith.constant 0 : i32
    %c0_i32_0 = arith.constant 0 : i32
    return %arg0, %c0_i32 : i32, i32
  }
  func.func @transform_12(%arg0: i32) -> (i32, i32) {
    %c0_i32 = arith.constant 0 : i32
    %c0_i32_0 = arith.constant 0 : i32
    return %arg0, %c0_i32 : i32, i32
  }
}

</mosaic_0001>

<llo_original>
// kernel: detector_forward.1
$region0: #{detector_forward.1}
  #allocation0 [shape = 'u32[]', space=smem, size = 0x4, offset = 0x4, fixed_abs, tag = 'smem constant byte address 0x4 - core index']
  #allocation1 [shape = 'u32[144,128]{1,0:T(1,128)}', space=vmem, size = 0x12000, scoped, tag = 'internal scratch']
  #allocation2 [shape = 'f32[1,1]{1,0:T(1,128)S(6)}', space=smem, size = 0x200, scoped, tag = 'scoped memory for detector_forward.1']
  %s0 = inlined_call_operand.vmem [shape: f32[8,32], index: 0, kind: input, shape index: {}]
  %s1 = inlined_call_operand.vmem [shape: f32[32,128], index: 1, kind: input, shape index: {}]
  %s2 = inlined_call_operand.vmem [shape: f32[1,128], index: 2, kind: input, shape index: {}]
  %s3 = inlined_call_operand.vmem [shape: f32[128,32], index: 3, kind: input, shape index: {}]
  %s4 = inlined_call_operand.vmem [shape: f32[1,32], index: 4, kind: input, shape index: {}]
  %s5 = inlined_call_operand.vmem [shape: f32[32,64], index: 5, kind: input, shape index: {}]
  %s6 = inlined_call_operand.vmem [shape: f32[1,64], index: 6, kind: input, shape index: {}]
  %s7 = inlined_call_operand.vmem [shape: f32[1,64], index: 7, kind: input, shape index: {}]
  %s8 = inlined_call_operand.<no memory space> [shape: f32[1,1], index: 8, kind: input, shape index: {}]
  %s9 = inlined_call_operand.vmem [shape: f32[8,1], index: 9, kind: output, shape index: {0}]
  %s10 = inlined_call_operand.hbm [shape: f32[8,32], index: 10, kind: output, shape index: {1}]
  %s11 = inlined_call_operand.hbm [shape: f32[8,32], index: 11, kind: output, shape index: {2}]
  %s12 = inlined_call_operand.hbm [shape: f32[8,64], index: 12, kind: output, shape index: {3}]
  %13 = xla_tuple %s9, %s10, %s11, %s12
  %s14 = sld [smem:[#allocation0]]
  $region70: #{detector_forward.1} parent=0
    _
  %s16 = ssub.s32 1, %s14
  %s17 = scalar_select 0, %s16, %s14
  %18 = sst [smem:[#allocation2]] %s8
  $region1: #{detector_forward.1} parent=0
    #allocation3 [shape = 'u8[4096]{0}', space=vmem, size = 0x1000, scoped, tag = 'output window, operand 1, single buffered']
    #allocation4 [shape = 's32[1]{0}', space=sflag, size = 0x4, scoped, tag = 'scoped memory for detector_forward.1']
    #allocation5 [shape = 'u8[4096]{0}', space=vmem, size = 0x1000, scoped, tag = 'output window, operand 2, single buffered']
    #allocation6 [shape = 's32[1]{0}', space=sflag, size = 0x4, scoped, tag = 'scoped memory for detector_forward.1']
    #allocation7 [shape = 'u8[4096]{0}', space=vmem, size = 0x1000, scoped, tag = 'output window, operand 3, single buffered']
    %19 = vsyncpa [#allocation4], 0
    %20 = vsyncpa [#allocation6], 0
    // Predicated region
    $region2: #{detector_forward.1} parent=1 // pred_check
      _
    $region3: #{detector_forward.1} parent=1 // pred_check_branch
      %22 = sbr.rel (0) target = $region5
    $region4: #{detector_forward.1} parent=1 // pred_region
      _
    $region5: #{detector_forward.1} parent=1 // pred_fallthru
      _
    // Predicated region
    $region6: #{detector_forward.1} parent=1 // pred_check
      _
    $region7: #{detector_forward.1} parent=1 // pred_check_branch
      %24 = sbr.rel (0) target = $region9
    $region8: #{detector_forward.1} parent=1 // pred_region
      _
    $region9: #{detector_forward.1} parent=1 // pred_fallthru
      _
    // Predicated region
    $region10: #{detector_forward.1} parent=1 // pred_check
      _
    $region11: #{detector_forward.1} parent=1 // pred_check_branch
      %26 = sbr.rel (0) target = $region13
    $region12: #{detector_forward.1} parent=1 // pred_region
      _
    $region13: #{detector_forward.1} parent=1 // pred_fallthru
      _
    // Predicated region
    $region14: #{detector_forward.1} parent=1 // pred_check
      _
    $region15: #{detector_forward.1} parent=1 // pred_check_branch
      %28 = sbr.rel (0) target = $region17
    $region16: #{detector_forward.1} parent=1 // pred_region
      _
    $region17: #{detector_forward.1} parent=1 // pred_fallthru
      _
    // Predicated region
    $region18: #{detector_forward.1} parent=1 // pred_check
      _
    $region19: #{detector_forward.1} parent=1 // pred_check_branch
      %30 = sbr.rel (0) target = $region21
    $region20: #{detector_forward.1} parent=1 // pred_region
      _
    $region21: #{detector_forward.1} parent=1 // pred_fallthru
      _
    // Predicated region
    $region22: #{detector_forward.1} parent=1 // pred_check
      _
    $region23: #{detector_forward.1} parent=1 // pred_check_branch
      %32 = sbr.rel (0) target = $region25
    $region24: #{detector_forward.1} parent=1 // pred_region
      _
    $region25: #{detector_forward.1} parent=1 // pred_fallthru
      _
    // Predicated region
    $region26: #{detector_forward.1} parent=1 // pred_check
      _
    $region27: #{detector_forward.1} parent=1 // pred_check_branch
      %34 = sbr.rel (0) target = $region29
    $region28: #{detector_forward.1} parent=1 // pred_region
      _
    $region29: #{detector_forward.1} parent=1 // pred_fallthru
      _
    // Predicated region
    $region30: #{detector_forward.1} parent=1 // pred_check
      _
    $region31: #{detector_forward.1} parent=1 // pred_check_branch
      %36 = sbr.rel (0) target = $region33
    $region32: #{detector_forward.1} parent=1 // pred_region
      _
    $region33: #{detector_forward.1} parent=1 // pred_fallthru
      _
    // Predicated region
    $region34: #{detector_forward.1} parent=1 // pred_check
      _
    $region35: #{detector_forward.1} parent=1 // pred_check_branch
      %38 = sbr.rel (0) target = $region37
    $region36: #{detector_forward.1} parent=1 // pred_region
      _
    $region37: #{detector_forward.1} parent=1 // pred_fallthru
      _
    %v39 = vld [vmem:[%s0] sm:$0xff]
    %v40 = vmax.f32 %v39, 0.0
    %v41 = vld [vmem:[%s1] sm:$0xff]
    %v42 = vld [vmem:[%s1 + $0x8] sm:$0xff]
    %v43 = vld [vmem:[%s1 + $0x10] sm:$0xff]
    %v44 = vld [vmem:[%s1 + $0x18] sm:$0xff]
    %v45 = vld [vmem:[%s2] sm:$0x1]
    %v47 = vlaneseq
    %v48 = vshrl.u32 %v47, 7
    %v49 = vsub.s32 0, %v48
    %v50 = vrot.slane %v45, %v49
    %vm52 = vcmask 261120
    %v54 = vsel %vm52, %v40, 0
    %56 = vmatprep.subr.mxu0 0.0
    %57 = vmatpush1.msra.mxu0 %v41
    %58 = vmatprep.subr.mxu0 0.0
    %59 = vmatpush1.msra.mxu0 %v42
    %60 = vmatprep.subr.mxu0 0.0
    %61 = vmatpush1.msra.mxu0 %v43
    %62 = vmatprep.subr.mxu0 0.0
    %63 = vmatpush1.msra.mxu0 %v44
    %64 = vmatprep.subr.mxu0 0.0
    %65 = vmatpush1.msra.mxu0 0.0
    %66 = vmatprep.subr.mxu0 0.0
    %67 = vmatpush1.msra.mxu0 0.0
    %68 = vmatprep.subr.mxu0 0.0
    %69 = vmatpush1.msra.mxu0 0.0
    %70 = vmatprep.subr.mxu0 0.0
    %71 = vmatpush1.msra.mxu0 0.0
    %72 = vmatprep.subr.mxu0 0.0
    %73 = vmatpush1.msra.mxu0 0.0
    %74 = vmatprep.subr.mxu0 0.0
    %75 = vmatpush1.msra.mxu0 0.0
    %76 = vmatprep.subr.mxu0 0.0
    %77 = vmatpush1.msra.mxu0 0.0
    %78 = vmatprep.subr.mxu0 0.0
    %79 = vmatpush1.msra.mxu0 0.0
    %80 = vmatprep.subr.mxu0 0.0
    %81 = vmatpush1.msra.mxu0 0.0
    %82 = vmatprep.subr.mxu0 0.0
    %83 = vmatpush1.msra.mxu0 0.0
    %84 = vmatprep.subr.mxu0 0.0
    %85 = vmatpush1.msra.mxu0 0.0
    %86 = vmatprep.subr.mxu0 0.0
    %87 = vmatpush1.msra.mxu0 0.0
    %88 = vmatprep.subr.mxu0 0.0
    %89 = vmatpush1.msra.mxu0 0.0
    %90 = vmatprep.subr.mxu0 0.0
    %91 = vmatpush1.msra.mxu0 0.0
    %92 = vmatprep.subr.mxu0 0.0
    %93 = vmatpush1.msra.mxu0 0.0
    %94 = vmatprep.subr.mxu0 0.0
    %95 = vmatpush1.msra.mxu0 0.0
    %96 = vmatprep.subr.mxu0 0.0
    %97 = vmatpush1.msra.mxu0 0.0
    %98 = vmatprep.subr.mxu0 0.0
    %99 = vmatpush1.msra.mxu0 0.0
    %100 = vmatprep.subr.mxu0 0.0
    %101 = vmatpush1.msra.mxu0 0.0
    %102 = vmatprep.subr.mxu0 0.0
    %103 = vmatpush1.msra.mxu0 0.0
    %104 = vmatprep.subr.mxu0 0.0
    %105 = vmatpush1.msra.mxu0 0.0
    %106 = vmatprep.subr.mxu0 0.0
    %107 = vmatpush1.msra.mxu0 0.0
    %108 = vmatprep.subr.mxu0 0.0
    %109 = vmatpush1.msra.mxu0 0.0
    %110 = vmatprep.subr.mxu0 0.0
    %111 = vmatpush1.msra.mxu0 0.0
    %112 = vmatprep.subr.mxu0 0.0
    %113 = vmatpush1.msra.mxu0 0.0
    %114 = vmatprep.subr.mxu0 0.0
    %115 = vmatpush1.msra.mxu0 0.0
    %116 = vmatprep.subr.mxu0 0.0
    %117 = vmatpush1.msra.mxu0 0.0
    %118 = vmatprep.subr.mxu0 0.0
    %119 = vmatpush1.msra.mxu0 0.0
    %120 = vmatprep.mubr.f32.mxu0 0.0
    %121 = vmatmul.mubr.f32.gmra.mrb[0].mxu0 %v54
    %v122 = vpop.f32.mrb[0].mxu0
    %v123 = vadd.f32 %v50, %v122
    %v124 = vpop.f32.mrb[0].mxu0
    %125 = vdwg.mxu0
    %v126 = vmax.f32 %v123, 0.0
    %v127 = vld [vmem:[%s3] sm:$0xff]
    %v128 = vld [vmem:[%s3 + $0x8] sm:$0xff]
    %v129 = vld [vmem:[%s3 + $0x10] sm:$0xff]
    %v130 = vld [vmem:[%s3 + $0x18] sm:$0xff]
    %v131 = vld [vmem:[%s3 + $0x20] sm:$0xff]
    %v132 = vld [vmem:[%s3 + $0x28] sm:$0xff]
    %v133 = vld [vmem:[%s3 + $0x30] sm:$0xff]
    %v134 = vld [vmem:[%s3 + $0x38] sm:$0xff]
    %v135 = vld [vmem:[%s3 + $0x40] sm:$0xff]
    %v136 = vld [vmem:[%s3 + $0x48] sm:$0xff]
    %v137 = vld [vmem:[%s3 + $0x50] sm:$0xff]
    %v138 = vld [vmem:[%s3 + $0x58] sm:$0xff]
    %v139 = vld [vmem:[%s3 + $0x60] sm:$0xff]
    %v140 = vld [vmem:[%s3 + $0x68] sm:$0xff]
    %v141 = vld [vmem:[%s3 + $0x70] sm:$0xff]
    %v142 = vld [vmem:[%s3 + $0x78] sm:$0xff]
    %v143 = vld [vmem:[%s4] sm:$0x1]
    %v145 = vlaneseq
    %v146 = vshrl.u32 %v145, 7
    %v147 = vsub.s32 0, %v146
    %v148 = vrot.slane %v143, %v147
    %150 = vmatprep.subr.mxu0 0.0
    %151 = vmatpush1.msra.mxu0 %v127
    %152 = vmatprep.subr.mxu0 0.0
    %153 = vmatpush1.msra.mxu0 %v128
    %154 = vmatprep.subr.mxu0 0.0
    %155 = vmatpush1.msra.mxu0 %v129
    %156 = vmatprep.subr.mxu0 0.0
    %157 = vmatpush1.msra.mxu0 %v130
    %158 = vmatprep.subr.mxu0 0.0
    %159 = vmatpush1.msra.mxu0 %v131
    %160 = vmatprep.subr.mxu0 0.0
    %161 = vmatpush1.msra.mxu0 %v132
    %162 = vmatprep.subr.mxu0 0.0
    %163 = vmatpush1.msra.mxu0 %v133
    %164 = vmatprep.subr.mxu0 0.0
    %165 = vmatpush1.msra.mxu0 %v134
    %166 = vmatprep.subr.mxu0 0.0
    %167 = vmatpush1.msra.mxu0 %v135
    %168 = vmatprep.subr.mxu0 0.0
    %169 = vmatpush1.msra.mxu0 %v136
    %170 = vmatprep.subr.mxu0 0.0
    %171 = vmatpush1.msra.mxu0 %v137
    %172 = vmatprep.subr.mxu0 0.0
    %173 = vmatpush1.msra.mxu0 %v138
    %174 = vmatprep.subr.mxu0 0.0
    %175 = vmatpush1.msra.mxu0 %v139
    %176 = vmatprep.subr.mxu0 0.0
    %177 = vmatpush1.msra.mxu0 %v140
    %178 = vmatprep.subr.mxu0 0.0
    %179 = vmatpush1.msra.mxu0 %v141
    %180 = vmatprep.subr.mxu0 0.0
    %181 = vmatpush1.msra.mxu0 %v142
    %182 = vmatprep.subr.mxu0 0.0
    %183 = vmatpush1.msra.mxu0 0.0
    %184 = vmatprep.subr.mxu0 0.0
    %185 = vmatpush1.msra.mxu0 0.0
    %186 = vmatprep.subr.mxu0 0.0
    %187 = vmatpush1.msra.mxu0 0.0
    %188 = vmatprep.subr.mxu0 0.0
    %189 = vmatpush1.msra.mxu0 0.0
    %190 = vmatprep.subr.mxu0 0.0
    %191 = vmatpush1.msra.mxu0 0.0
    %192 = vmatprep.subr.mxu0 0.0
    %193 = vmatpush1.msra.mxu0 0.0
    %194 = vmatprep.subr.mxu0 0.0
    %195 = vmatpush1.msra.mxu0 0.0
    %196 = vmatprep.subr.mxu0 0.0
    %197 = vmatpush1.msra.mxu0 0.0
    %198 = vmatprep.subr.mxu0 0.0
    %199 = vmatpush1.msra.mxu0 0.0
    %200 = vmatprep.subr.mxu0 0.0
    %201 = vmatpush1.msra.mxu0 0.0
    %202 = vmatprep.subr.mxu0 0.0
    %203 = vmatpush1.msra.mxu0 0.0
    %204 = vmatprep.subr.mxu0 0.0
    %205 = vmatpush1.msra.mxu0 0.0
    %206 = vmatprep.subr.mxu0 0.0
    %207 = vmatpush1.msra.mxu0 0.0
    %208 = vmatprep.subr.mxu0 0.0
    %209 = vmatpush1.msra.mxu0 0.0
    %210 = vmatprep.subr.mxu0 0.0
    %211 = vmatpush1.msra.mxu0 0.0
    %212 = vmatprep.subr.mxu0 0.0
    %213 = vmatpush1.msra.mxu0 0.0
    %214 = vmatprep.mubr.f32.mxu0 0.0
    %215 = vmatmul.mubr.f32.gmra.mrb[0].mxu0 %v126
    %v216 = vpop.f32.mrb[0].mxu0
    %v217 = vadd.f32 %v148, %v216
    %v218 = vpop.f32.mrb[0].mxu0
    %219 = vdwg.mxu0
    %v220 = vsel %vm52, %v217, -inf
    %221 = vmax.xlane.f32.xlu0 %v220
    %v222 = vpop.xlane.xlu0 %221
    %v223 = vsub.f32 %v217, %v222
    %v224 = vmul.f32 %v223, 1.442695
    %v225 = vpow.pop %v224
    %v226 = vsel %vm52, %v225, 0.0
    %227 = vadd.xlane.f32.xlu0 %v226
    %v228 = vpop.xlane.xlu0 %227
    %v229 = vrcp.pop %v228
    %v230 = vmul.f32 %v225, %v229
    %v231 = vmul.f32 %v230, %v40
    %v232 = vld [vmem:[%s5] sm:$0xff]
    %v233 = vld [vmem:[%s5 + $0x8] sm:$0xff]
    %v234 = vld [vmem:[%s5 + $0x10] sm:$0xff]
    %v235 = vld [vmem:[%s5 + $0x18] sm:$0xff]
    %v236 = vld [vmem:[%s6] sm:$0x1]
    %v238 = vlaneseq
    %v239 = vshrl.u32 %v238, 7
    %v240 = vsub.s32 0, %v239
    %v241 = vrot.slane %v236, %v240
    %v244 = vsel %vm52, %v231, 0
    %246 = vmatprep.subr.mxu0 0.0
    %247 = vmatpush1.msra.mxu0 %v232
    %248 = vmatprep.subr.mxu0 0.0
    %249 = vmatpush1.msra.mxu0 %v233
    %250 = vmatprep.subr.mxu0 0.0
    %251 = vmatpush1.msra.mxu0 %v234
    %252 = vmatprep.subr.mxu0 0.0
    %253 = vmatpush1.msra.mxu0 %v235
    %254 = vmatprep.subr.mxu0 0.0
    %255 = vmatpush1.msra.mxu0 0.0
    %256 = vmatprep.subr.mxu0 0.0
    %257 = vmatpush1.msra.mxu0 0.0
    %258 = vmatprep.subr.mxu0 0.0
    %259 = vmatpush1.msra.mxu0 0.0
    %260 = vmatprep.subr.mxu0 0.0
    %261 = vmatpush1.msra.mxu0 0.0
    %262 = vmatprep.subr.mxu0 0.0
    %263 = vmatpush1.msra.mxu0 0.0
    %264 = vmatprep.subr.mxu0 0.0
    %265 = vmatpush1.msra.mxu0 0.0
    %266 = vmatprep.subr.mxu0 0.0
    %267 = vmatpush1.msra.mxu0 0.0
    %268 = vmatprep.subr.mxu0 0.0
    %269 = vmatpush1.msra.mxu0 0.0
    %270 = vmatprep.subr.mxu0 0.0
    %271 = vmatpush1.msra.mxu0 0.0
    %272 = vmatprep.subr.mxu0 0.0
    %273 = vmatpush1.msra.mxu0 0.0
    %274 = vmatprep.subr.mxu0 0.0
    %275 = vmatpush1.msra.mxu0 0.0
    %276 = vmatprep.subr.mxu0 0.0
    %277 = vmatpush1.msra.mxu0 0.0
    %278 = vmatprep.subr.mxu0 0.0
    %279 = vmatpush1.msra.mxu0 0.0
    %280 = vmatprep.subr.mxu0 0.0
    %281 = vmatpush1.msra.mxu0 0.0
    %282 = vmatprep.subr.mxu0 0.0
    %283 = vmatpush1.msra.mxu0 0.0
    %284 = vmatprep.subr.mxu0 0.0
    %285 = vmatpush1.msra.mxu0 0.0
    %286 = vmatprep.subr.mxu0 0.0
    %287 = vmatpush1.msra.mxu0 0.0
    %288 = vmatprep.subr.mxu0 0.0
    %289 = vmatpush1.msra.mxu0 0.0
    %290 = vmatprep.subr.mxu0 0.0
    %291 = vmatpush1.msra.mxu0 0.0
    %292 = vmatprep.subr.mxu0 0.0
    %293 = vmatpush1.msra.mxu0 0.0
    %294 = vmatprep.subr.mxu0 0.0
    %295 = vmatpush1.msra.mxu0 0.0
    %296 = vmatprep.subr.mxu0 0.0
    %297 = vmatpush1.msra.mxu0 0.0
    %298 = vmatprep.subr.mxu0 0.0
    %299 = vmatpush1.msra.mxu0 0.0
    %300 = vmatprep.subr.mxu0 0.0
    %301 = vmatpush1.msra.mxu0 0.0
    %302 = vmatprep.subr.mxu0 0.0
    %303 = vmatpush1.msra.mxu0 0.0
    %304 = vmatprep.subr.mxu0 0.0
    %305 = vmatpush1.msra.mxu0 0.0
    %306 = vmatprep.subr.mxu0 0.0
    %307 = vmatpush1.msra.mxu0 0.0
    %308 = vmatprep.subr.mxu0 0.0
    %309 = vmatpush1.msra.mxu0 0.0
    %310 = vmatprep.mubr.f32.mxu0 0.0
    %311 = vmatmul.mubr.f32.gmra.mrb[0].mxu0 %v244
    %v312 = vpop.f32.mrb[0].mxu0
    %v313 = vadd.f32 %v241, %v312
    %v314 = vpop.f32.mrb[0].mxu0
    %315 = vdwg.mxu0
    %v316 = vmax.f32 %v313, 0.0
    %v317 = vld [vmem:[%s7] sm:$0x1]
    %v319 = vlaneseq
    %v320 = vshrl.u32 %v319, 7
    %v321 = vsub.s32 0, %v320
    %v322 = vrot.slane %v317, %v321
    %v324 = vmul.f32 %v316, %v322
    %vm325 = vcmask 523264
    %v326 = vsel %vm325, %v324, 0.0
    %327 = vadd.xlane.f32.xlu0 %v326
    %v328 = vpop.xlane.xlu0 %327
    %s329 = sld [smem:[#allocation2]]
    %v330 = vstv %s329
    %v331 = vadd.f32 %v328, %v330
    %v332 = vsub.f32 0.0, %v331
    %v333 = vmul.f32 %v332, 1.442695
    %v334 = vpow.pop %v333
    %v335 = vadd.f32 %v334, 1.0
    %v336 = vrcp.pop %v335
    %v337 = vmul.f32 1.0, %v336
    %vm338 = vcmask 7168
    %339 = vst.msk [vmem:[%s9] sm:$0xff] %vm338, %v337
    %340 = vst.msk [vmem:[#allocation3] sm:$0xff] %vm52, %v231
    %341 = vst.msk [vmem:[#allocation5] sm:$0xff] %vm52, %v230
    %342 = vst.msk [vmem:[#allocation7] sm:$0xff] %vm325, %v313
    // Predicated region
    $region38: #{detector_forward.1} parent=1 // pred_check
      _
    $region39: #{detector_forward.1} parent=1 // pred_check_branch
      %344 = sbr.rel (0) target = $region41
    $region40: #{detector_forward.1} parent=1 // pred_region
      _
    $region41: #{detector_forward.1} parent=1 // pred_fallthru
      _
    // Predicated region
    $region42: #{detector_forward.1} parent=1 // pred_check
      _
    $region43: #{detector_forward.1} parent=1 // pred_check_branch
      %346 = sbr.rel (0) target = $region45
    $region44: #{detector_forward.1} parent=1 // pred_region
      %s348 = ssub.s32 128, 128
      %349 = vsyncadd [#allocation4], %s348
      %s351 = sshll.u32 [#allocation3], 4
      %s352 = int_to_ptr.vmem [resolvable:$true] %s351
      %354 = dma.vmem_to_hbm [thread:$0]  %s352, 128, %s10, [#allocation4]
    $region45: #{detector_forward.1} parent=1 // pred_fallthru
      _
    // Predicated region
    $region46: #{detector_forward.1} parent=1 // pred_check
      _
    $region47: #{detector_forward.1} parent=1 // pred_check_branch
      %356 = sbr.rel (0) target = $region49
    $region48: #{detector_forward.1} parent=1 // pred_region
      %s358 = ssub.s32 128, 128
      %359 = vsyncadd [#allocation6], %s358
      %s361 = sshll.u32 [#allocation5], 4
      %s362 = int_to_ptr.vmem [resolvable:$true] %s361
      %364 = dma.vmem_to_hbm [thread:$0]  %s362, 128, %s11, [#allocation6]
    $region49: #{detector_forward.1} parent=1 // pred_fallthru
      _
    // Predicated region
    $region50: #{detector_forward.1} parent=1 // pred_check
      _
    $region51: #{detector_forward.1} parent=1 // pred_check_branch
      %366 = sbr.rel (0) target = $region53
    $region52: #{detector_forward.1} parent=1 // pred_region
      %s368 = ssub.s32 128, 128
      %369 = vsyncadd [#allocation6], %s368
      %s371 = sshll.u32 [#allocation7], 4
      %s372 = int_to_ptr.vmem [resolvable:$true] %s371
      %374 = dma.vmem_to_hbm [thread:$0]  %s372, 128, %s12, [#allocation6]
    $region53: #{detector_forward.1} parent=1 // pred_fallthru
      _
    // Predicated region
    $region54: #{detector_forward.1} parent=1 // pred_check
      _
    $region55: #{detector_forward.1} parent=1 // pred_check_branch
      %376 = sbr.rel (0) target = $region57
    $region56: #{detector_forward.1} parent=1 // pred_region
      _
    $region57: #{detector_forward.1} parent=1 // pred_fallthru
      _
    // Predicated region
    $region58: #{detector_forward.1} parent=1 // pred_check
      _
    $region59: #{detector_forward.1} parent=1 // pred_check_branch
      %378 = sbr.rel (0) target = $region61
    $region60: #{detector_forward.1} parent=1 // pred_region
      %379 = dma.done [#allocation4], 128
    $region61: #{detector_forward.1} parent=1 // pred_fallthru
      _
    // Predicated region
    $region62: #{detector_forward.1} parent=1 // pred_check
      _
    $region63: #{detector_forward.1} parent=1 // pred_check_branch
      %381 = sbr.rel (0) target = $region65
    $region64: #{detector_forward.1} parent=1 // pred_region
      %382 = dma.done [#allocation6], 128
    $region65: #{detector_forward.1} parent=1 // pred_fallthru
      _
    // Predicated region
    $region66: #{detector_forward.1} parent=1 // pred_check
      _
    $region67: #{detector_forward.1} parent=1 // pred_check_branch
      %384 = sbr.rel (0) target = $region69
    $region68: #{detector_forward.1} parent=1 // pred_region
      %385 = dma.done [#allocation6], 128
    $region69: #{detector_forward.1} parent=1 // pred_fallthru
      _
    %386 = vsyncpa [#allocation4], 1
    %387 = vsyncpa [#allocation6], 1

</llo_original>
